<compile_context>
chip_gen: v5e
topology: v5e:2x2
jax: 0.10.0
libtpu: 0.0.40
codegen_flags: <defaults>
</compile_context>

<pallas_src>
import functools

import jax
import jax.numpy as jnp
import numpy as np
from jax import lax
from jax.experimental import pallas as pl
from jax.experimental.pallas import tpu as pltpu


_DEFAULT_LANE_TILE = 32 * 1024      # joints (lanes) per grid step (fallback path)
_MAX_BLOCK_BYTES = 512 * 1024       # per-input VMEM block budget (x2 inputs x2 buffers)


def _round_up(x, m):
    return (x + m - 1) // m * m


def _round_down(x, m):
    return max(m, x // m * m)


# ---------------------------------------------------------------------------
# Path 1: flat, transpose-free, lane-dense kernels (N % 128 == 0, small D).
# Inputs are viewed as (R, 128*D) with R = N // 128; row r holds joints
# [128*r, 128*(r+1)) with joint j's D coords at lanes D*j .. D*j+D-1.
# ---------------------------------------------------------------------------

def _flat_joint_dist(p_ref, l_ref, d):
    """Per-joint L2 distances for one (tile_r, 128*d) block -> (tile_r, 128)."""
    diff = p_ref[...].astype(jnp.float32) - l_ref[...].astype(jnp.float32)
    sq = diff * diff                                            # (tile_r, 128*d)
    # Static 0/1 grouping matrix: group[k, j] = 1 iff lane k belongs to joint j.
    kk = lax.broadcasted_iota(jnp.int32, (d * 128, 128), 0)
    jj = lax.broadcasted_iota(jnp.int32, (d * 128, 128), 1)
    group = (kk // d == jj).astype(jnp.float32)                 # (128*d, 128)
    # The grouping reduce rides the otherwise-idle MXU (kernel is mem-bound).
    ssq = jnp.dot(sq, group, preferred_element_type=jnp.float32,
                  precision=jax.lax.Precision.HIGHEST)          # (tile_r, 128)
    return jnp.sqrt(ssq)


def _flat_partial_sum_kernel(p_ref, l_ref, acc_ref, *, d, tile_r, n_valid):
    """Accumulate per-(row,lane) partial sums of per-joint L2 distances."""
    i = pl.program_id(0)

    @pl.when(i == 0)
    def _():
        acc_ref[...] = jnp.zeros_like(acc_ref)

    dist = _flat_joint_dist(p_ref, l_ref, d)                    # (tile_r, 128)
    row = lax.broadcasted_iota(jnp.int32, (tile_r, 128), 0)
    lane = lax.broadcasted_iota(jnp.int32, (tile_r, 128), 1)
    joint = (i * tile_r + row) * 128 + lane
    # Mask joints past the true count (ragged last row-block: garbage rows).
    acc_ref[...] += jnp.where(joint < n_valid, dist, 0.0)


def _flat_dist_kernel(p_ref, l_ref, o_ref, *, d):
    """Per-joint L2 distances; lane-dense (tile_r, 128) output block."""
    o_ref[...] = _flat_joint_dist(p_ref, l_ref, d)


def _mpjpe_flat(pred, label, reduction, N, D, orig_shape, row_tile):
    R = N // 128
    C = 128 * D
    # Free row-major reshapes (no data movement): joints interleaved on lanes.
    p = pred.reshape(R, C)
    l = label.reshape(R, C)

    itemsize = jnp.dtype(p.dtype).itemsize
    cap = _round_down(_MAX_BLOCK_BYTES // (C * itemsize), 8)
    if row_tile is None:
        row_tile = cap
    row_tile = int(row_tile)
    if row_tile >= R:
        row_tile = R                       # single grid step; full-extent block
    else:
        row_tile = _round_down(min(row_tile, cap), 8)

    grid = (pl.cdiv(R, row_tile),)
    in_specs = [
        pl.BlockSpec((row_tile, C), lambda i: (i, 0)),
        pl.BlockSpec((row_tile, C), lambda i: (i, 0)),
    ]

    if reduction in ("mean", "sum"):
        partials = pl.pallas_call(
            functools.partial(_flat_partial_sum_kernel,
                              d=D, tile_r=row_tile, n_valid=N),
            out_shape=jax.ShapeDtypeStruct((row_tile, 128), jnp.float32),
            grid=grid,
            in_specs=in_specs,
            # Same output block every step -> resident VMEM accumulator.
            out_specs=pl.BlockSpec((row_tile, 128), lambda i: (0, 0)),
            compiler_params=pltpu.CompilerParams(
                dimension_semantics=("arbitrary",)),
        )(p, l)
        total = jnp.sum(partials)          # one tiny final reduce in XLA
        if reduction == "mean":
            return total / jnp.float32(N)
        return total

    # reduction == 'none'
    dist = pl.pallas_call(
        functools.partial(_flat_dist_kernel, d=D),
        out_shape=jax.ShapeDtypeStruct((R, 128), jnp.float32),
        grid=grid,
        in_specs=in_specs,
        out_specs=pl.BlockSpec((row_tile, 128), lambda i: (i, 0)),
        compiler_params=pltpu.CompilerParams(
            dimension_semantics=("parallel",)),
    )(p, l)
    return dist.reshape(orig_shape[:-1])


# ---------------------------------------------------------------------------
# Path 2: transposed fallback (any N, any D).  Joints on lanes, coords on
# sublanes; per-joint reduce is a cheap D-sublane sum.
# ---------------------------------------------------------------------------

def _tr_partial_sum_kernel(pred_ref, label_ref, partial_ref, *, n_valid, lane_tile):
    i = pl.program_id(0)

    @pl.when(i == 0)
    def _():
        partial_ref[...] = jnp.zeros_like(partial_ref)

    d = pred_ref[...].astype(jnp.float32) - label_ref[...].astype(jnp.float32)
    ssq = jnp.sum(d * d, axis=0, keepdims=True)        # (1, lane_tile)
    dist = jnp.sqrt(ssq)

    lane = lax.broadcasted_iota(jnp.int32, (1, lane_tile), 1)
    valid = (i * lane_tile + lane) < n_valid
    partial_ref[...] += jnp.where(valid, dist, 0.0)


def _tr_dist_kernel(pred_ref, label_ref, out_ref):
    d = pred_ref[...].astype(jnp.float32) - label_ref[...].astype(jnp.float32)
    out_ref[...] = jnp.sqrt(jnp.sum(d * d, axis=0, keepdims=True))


def _mpjpe_transposed(pred, label, reduction, N, D, orig_shape, lane_tile):
    # Lane-dense layout via a single XLA transpose (layout plumbing; this path
    # is only taken for shapes that are small / latency-bound anyway).
    p = pred.reshape(N, D).swapaxes(0, 1)      # (D, N)
    l = label.reshape(N, D).swapaxes(0, 1)     # (D, N)

    if lane_tile is None:
        lane_tile = _DEFAULT_LANE_TILE
    itemsize = jnp.dtype(p.dtype).itemsize
    budget_tile = max(128, (_MAX_BLOCK_BYTES // (D * itemsize)) // 128 * 128)
    lane_tile = int(min(lane_tile, budget_tile, _round_up(N, 128)))

    grid = (pl.cdiv(N, lane_tile),)
    in_specs = [
        pl.BlockSpec((D, lane_tile), lambda i: (0, i)),
        pl.BlockSpec((D, lane_tile), lambda i: (0, i)),
    ]

    if reduction in ("mean", "sum"):
        partials = pl.pallas_call(
            functools.partial(_tr_partial_sum_kernel,
                              n_valid=N, lane_tile=lane_tile),
            out_shape=jax.ShapeDtypeStruct((1, lane_tile), jnp.float32),
            grid=grid,
            in_specs=in_specs,
            out_specs=pl.BlockSpec((1, lane_tile), lambda i: (0, 0)),
            compiler_params=pltpu.CompilerParams(
                dimension_semantics=("arbitrary",)),
        )(p, l)
        total = jnp.sum(partials)
        if reduction == "mean":
            return total / jnp.float32(N)
        return total

    # reduction == 'none'
    dist = pl.pallas_call(
        _tr_dist_kernel,
        out_shape=jax.ShapeDtypeStruct((1, N), jnp.float32),
        grid=grid,
        in_specs=in_specs,
        out_specs=pl.BlockSpec((1, lane_tile), lambda i: (0, i)),
        compiler_params=pltpu.CompilerParams(
            dimension_semantics=("parallel",)),
    )(p, l)
    return dist.reshape(orig_shape[:-1])


# ---------------------------------------------------------------------------
# Public wrapper.
# ---------------------------------------------------------------------------

@functools.partial(jax.jit,
                   static_argnames=("reduction", "lane_tile", "row_tile"))
def mpjpe_pallas(pred_batch, label_batch, reduction="mean",
                 lane_tile=None, row_tile=None):
    assert pred_batch.shape == label_batch.shape
    orig_shape = pred_batch.shape
    D = int(orig_shape[-1])
    N = int(np.prod(orig_shape[:-1]))

    # Flat transpose-free path when the joint count reshapes cleanly into
    # 128-wide lane rows and the grouping matrix stays tiny.
    if N > 0 and D <= 8 and (N % 128 == 0):
        return _mpjpe_flat(pred_batch, label_batch, reduction,
                           N, D, orig_shape, row_tile)
    return _mpjpe_transposed(pred_batch, label_batch, reduction,
                             N, D, orig_shape, lane_tile)


def mpjpe_reference(pred, label, reduction="mean"):
    diff = jnp.linalg.norm(
        pred.astype(jnp.float32) - label.astype(jnp.float32), axis=-1)
    if reduction == "mean":
        return diff.mean()
    if reduction == "sum":
        return diff.sum()
    return diff


if __name__ == "__main__":
    key = jax.random.PRNGKey(0)
    keys = jax.random.split(key, 6)

    cases = []
    # Small pose batch -> transposed fallback, single grid step.
    cases.append((jax.random.normal(keys[0], (2, 17, 3), dtype=jnp.float32),
                  jax.random.normal(keys[1], (2, 17, 3), dtype=jnp.float32),
                  dict()))
    # Fallback with a tiny lane tile -> multi-step grid, resident accumulator,
    # ragged-edge masking.
    cases.append((jax.random.normal(keys[2], (16, 17, 3), dtype=jnp.float32),
                  jax.random.normal(keys[3], (16, 17, 3), dtype=jnp.float32),
                  dict(lane_tile=128)))
    # N = 128*17 joints -> flat lane-dense path; small row tile exercises the
    # multi-step grid and ragged row-block masking.
    cases.append((jax.random.normal(keys[4], (128, 17, 3), dtype=jnp.float32),
                  jax.random.normal(keys[5], (128, 17, 3), dtype=jnp.float32),
                  dict(row_tile=8)))

    ok = True
    for p, l, kw in cases:
        for red in ("mean", "sum", "none"):
            out = jax.block_until_ready(
                mpjpe_pallas(p, l, reduction=red, **kw))
            ref = mpjpe_reference(p, l, red)
            ok &= bool(np.allclose(np.asarray(out), np.asarray(ref),
                                   rtol=1e-5, atol=1e-5))

    assert ok
    print("KERNEL_OK")
</pallas_src>

<mosaic_0001>
module attributes {stable_mosaic.version = 11 : i64} {
  func.func @_tr_partial_sum_kernel(%arg0: i32, %arg1: memref<3x128xf32, #tpu.memory_space<vmem>>, %arg2: memref<3x128xf32, #tpu.memory_space<vmem>>, %arg3: memref<1x128xf32, #tpu.memory_space<vmem>>) attributes {dimension_semantics = [#tpu.dimension_semantics<arbitrary>], iteration_bounds = array<i64: 1>, scalar_prefetch = 0 : i64, scratch_operands = 0 : i64, tpu.core_type = #tpu.core_type<tc>, window_params = [{transform_indices = @transform_0, window_bounds = array<i64: 3, 128>}, {transform_indices = @transform_1, window_bounds = array<i64: 3, 128>}, {pipeline_mode = #tpu.pipeline_mode<synchronous>, transform_indices = @transform_2, window_bounds = array<i64: 1, 128>}]} {
    %c0_i32 = arith.constant 0 : i32
    %0 = arith.cmpi eq, %arg0, %c0_i32 : i32
    %1 = arith.extui %0 : i1 to i32
    %c0_i32_0 = arith.constant 0 : i32
    %2 = arith.cmpi ne, %1, %c0_i32_0 : i32
    scf.if %2 {
      %cst_9 = arith.constant 0.000000e+00 : f32
      %21 = vector.broadcast %cst_9 : f32 to vector<1x128xf32>
      %c0_10 = arith.constant 0 : index
      %c0_11 = arith.constant 0 : index
      %22 = vector.load %arg3[%c0_10, %c0_11] : memref<1x128xf32, #tpu.memory_space<vmem>>, vector<1x128xf32>
      tpu.vector_store %arg3[%c0_10, %c0_11], %21 {strides = array<i32>} : memref<1x128xf32, #tpu.memory_space<vmem>>, vector<1x128xf32>,
    } else {
    }
    %c0 = arith.constant 0 : index
    %c0_1 = arith.constant 0 : index
    %3 = vector.load %arg1[%c0, %c0_1] : memref<3x128xf32, #tpu.memory_space<vmem>>, vector<3x128xf32>
    %c0_2 = arith.constant 0 : index
    %c0_3 = arith.constant 0 : index
    %4 = vector.load %arg2[%c0_2, %c0_3] : memref<3x128xf32, #tpu.memory_space<vmem>>, vector<3x128xf32>
    %5 = arith.subf %3, %4 : vector<3x128xf32>
    %6 = arith.mulf %5, %5 : vector<3x128xf32>
    %cst = arith.constant dense<0.000000e+00> : vector<128xf32>
    %7 = vector.multi_reduction <add>, %6, %cst [0] : vector<3x128xf32> to vector<128xf32>
    %8 = vector.shape_cast %7 : vector<128xf32> to vector<1x128xf32>
    %9 = math.sqrt %8 : vector<1x128xf32>
    %10 = tpu.iota {dimensions = array<i32: 1>} : vector<1x128xi32>
    %c128_i32 = arith.constant 128 : i32
    %11 = arith.muli %arg0, %c128_i32 : i32
    %12 = vector.broadcast %11 : i32 to vector<1x128xi32>
    %13 = arith.addi %12, %10 : vector<1x128xi32>
    %c34_i32 = arith.constant 34 : i32
    %14 = vector.broadcast %c34_i32 : i32 to vector<1x128xi32>
    %15 = arith.cmpi slt, %13, %14 : vector<1x128xi32>
    %c0_4 = arith.constant 0 : index
    %c0_5 = arith.constant 0 : index
    %16 = vector.load %arg3[%c0_4, %c0_5] : memref<1x128xf32, #tpu.memory_space<vmem>>, vector<1x128xf32>
    %cst_6 = arith.constant 0.000000e+00 : f32
    %17 = vector.broadcast %cst_6 : f32 to vector<1x128xf32>
    %18 = arith.select %15, %9, %17 : vector<1x128xi1>, vector<1x128xf32>
    %19 = arith.addf %16, %18 : vector<1x128xf32>
    %c0_7 = arith.constant 0 : index
    %c0_8 = arith.constant 0 : index
    %20 = vector.load %arg3[%c0_7, %c0_8] : memref<1x128xf32, #tpu.memory_space<vmem>>, vector<1x128xf32>
    tpu.vector_store %arg3[%c0_7, %c0_8], %19 {strides = array<i32>} : memref<1x128xf32, #tpu.memory_space<vmem>>, vector<1x128xf32>,
    return
  }
  func.func @transform_0(%arg0: i32) -> (i32, i32) {
    %c0_i32 = arith.constant 0 : i32
    %c0_i32_0 = arith.constant 0 : i32
    return %c0_i32, %arg0 : i32, i32
  }
  func.func @transform_1(%arg0: i32) -> (i32, i32) {
    %c0_i32 = arith.constant 0 : i32
    %c0_i32_0 = arith.constant 0 : i32
    return %c0_i32, %arg0 : i32, i32
  }
  func.func @transform_2(%arg0: i32) -> (i32, i32) {
    %c0_i32 = arith.constant 0 : i32
    %c0_i32_0 = arith.constant 0 : i32
    %c0_i32_1 = arith.constant 0 : i32
    return %c0_i32, %c0_i32_0 : i32, i32
  }
}

</mosaic_0001>

<llo_original>
// kernel: mpjpe_pallas.1
$region0: #{mpjpe_pallas.1}
  #allocation0 [shape = 'u32[]', space=smem, size = 0x4, offset = 0x4, fixed_abs, tag = 'smem constant byte address 0x4 - core index']
  #allocation1 [shape = 'u32[72,128]{1,0:T(1,128)}', space=vmem, size = 0x9000, scoped, tag = 'internal scratch']
  %s0 = inlined_call_operand.vmem [shape: f32[3,34], index: 0, kind: input, shape index: {}]
  %s1 = inlined_call_operand.vmem [shape: f32[3,34], index: 1, kind: input, shape index: {}]
  %s2 = inlined_call_operand.vmem [shape: f32[1,128], index: 2, kind: output, shape index: {}]
  %s3 = sld [smem:[#allocation0]]
  $region22: #{mpjpe_pallas.1} parent=0
    _
  %s5 = ssub.s32 1, %s3
  %s6 = scalar_select 0, %s5, %s3
  // Predicated region
  $region2: #{mpjpe_pallas.1} parent=0 // pred_check
    _
  $region3: #{mpjpe_pallas.1} parent=0 // pred_check_branch
    %8 = sbr.rel (0) target = $region5
  $region4: #{mpjpe_pallas.1} parent=0 // pred_region
    _
  $region5: #{mpjpe_pallas.1} parent=0 // pred_fallthru
    _
  // Predicated region
  $region6: #{mpjpe_pallas.1} parent=0 // pred_check
    _
  $region7: #{mpjpe_pallas.1} parent=0 // pred_check_branch
    %10 = sbr.rel (0) target = $region9
  $region8: #{mpjpe_pallas.1} parent=0 // pred_region
    _
  $region9: #{mpjpe_pallas.1} parent=0 // pred_fallthru
    _
  %p11 = scmp.eq.s32.totalorder 0, 0
  // Predicated region
  $region10: #{mpjpe_pallas.1} parent=0 // pred_check
    %p12 = pneg %p11
  $region11: #{mpjpe_pallas.1} parent=0 // pred_check_branch
    %14 = sbr.rel (%p12) target = $region13
  $region12: #{mpjpe_pallas.1} parent=0 // pred_region
    %15 = vst [vmem:[%s2] sm:$0x1] 0.0
  $region13: #{mpjpe_pallas.1} parent=0 // pred_fallthru
    _
  %v16 = vld [vmem:[%s0] sm:$0x7]
  %v17 = vld [vmem:[%s1] sm:$0x7]
  %v18 = vsub.f32 %v16, %v17
  %v19 = vmul.f32 %v18, %v18
  %vm20 = vcmask 1042432
  %v21 = vsel %vm20, %v19, 0.0
  %v22 = vrot.slane %v21, 4
  %v23 = vadd.f32 %v21, %v22
  %v24 = vrot.slane %v23, 2
  %v25 = vadd.f32 %v23, %v24
  %v26 = vrot.slane %v25, 1
  %v27 = vadd.f32 %v25, %v26
  %v28 = vrsqrt.pop %v27
  %v29 = vmul.f32 %v28, %v27
  %v30 = vmul.f32 %v29, %v28
  %v31 = vmul.f32 0.5, %v30
  %v32 = vsub.f32 1.5, %v31
  %v33 = vmul.f32 %v28, %v32
  %v34 = vmul.f32 %v27, %v33
  %vm35 = vcmp.eq.f32.partialorder %v27, inf
  %v36 = vsel %vm35, %v27, %v34
  %vm37 = vcmp.eq.f32.partialorder %v27, 0.0
  %v38 = vand.u32 %v27, 2147483648
  %v39 = vsel %vm37, %v38, %v36
  %v40 = vlaneseq
  %v41 = vand.u32 %v40, 127
  %s42 = smul.u32 0, 128
  %v43 = vstv %s42
  %v44 = vadd.s32 %v43, %v41
  %vm45 = vcmp.lt.s32.totalorder %v44, 34
  %v46 = vld [vmem:[%s2] sm:$0x1]
  %v47 = vsel %vm45, %v39, 0.0
  %v48 = vadd.f32 %v46, %v47
  %49 = vst [vmem:[%s2] sm:$0x1] %v48
  // Predicated region
  $region14: #{mpjpe_pallas.1} parent=0 // pred_check
    _
  $region15: #{mpjpe_pallas.1} parent=0 // pred_check_branch
    %51 = sbr.rel (0) target = $region17
  $region16: #{mpjpe_pallas.1} parent=0 // pred_region
    _
  $region17: #{mpjpe_pallas.1} parent=0 // pred_fallthru
    _
  // Predicated region
  $region18: #{mpjpe_pallas.1} parent=0 // pred_check
    _
  $region19: #{mpjpe_pallas.1} parent=0 // pred_check_branch
    %53 = sbr.rel (0) target = $region21
  $region20: #{mpjpe_pallas.1} parent=0 // pred_region
    _
  $region21: #{mpjpe_pallas.1} parent=0 // pred_fallthru
    _

</llo_original>
